<compile_context>
chip_gen: v5e
topology: v5e:2x2
jax: 0.10.0
libtpu: 0.0.40
codegen_flags: <defaults>
</compile_context>

<pallas_src>
import functools
import math

import jax
import jax.numpy as jnp
from jax.experimental import pallas as pl
from jax.experimental.pallas import tpu as pltpu


def _round_up(x, m):
    return ((x + m - 1) // m) * m


# ----------------------------- Pallas kernels -------------------------------

def _conv_kwfold_kernel(x_ref, w_ref, b_ref, o_ref, *, toh, ow, kh, kwc,
                        stride, dilation, compute_dtype):
    """Small-C path: K = KW*C folded, KH GEMMs accumulated into the output Ref.

    x_ref: (Hp, OW, KW*C)   W-unrolled padded rows of image n (wrapper-folded)
    w_ref: (KH, KW*C, OCp)  per-kernel-row weights, OC zero-padded to OCp (x128)
    b_ref: (1, OCp)         bias, zero-padded
    o_ref: (TM, OCp)        flattened (TOH*OW) output pixels of this row block
    """
    r = pl.program_id(1)
    oh0 = r * toh
    tm = toh * ow

    # Bias-initialised accumulation directly into the VMEM-resident output Ref:
    # no functional accumulator chain, no separate bias epilogue pass.
    o_ref[...] = jnp.broadcast_to(b_ref[...], o_ref.shape)

    for ih in range(kh):                       # KH is small & static -> unrolled
        h0 = oh0 * stride + ih * dilation
        if stride == 1:
            rows = x_ref[pl.ds(h0, toh), :, :]          # (TOH, OW, KW*C) contiguous
        else:
            rows = x_ref[pl.ds(h0, toh, stride), :, :]
        lhs = rows.reshape(tm, kwc).astype(compute_dtype)
        o_ref[...] += jnp.dot(lhs, w_ref[ih],
                              preferred_element_type=jnp.float32)


def _conv_per_tap_kernel(x_ref, w_ref, b_ref, o_ref, *, toh, ow, kh, kw, c,
                         stride, dilation, compute_dtype):
    """Large-C path (K=C already deep): per-tap GEMMs, Ref accumulation.

    x_ref: (Hp, Wp, C); w_ref: (KH*KW, C, OCp); b_ref: (1, OCp); o_ref: (TM, OCp)
    """
    r = pl.program_id(1)
    oh0 = r * toh
    tm = toh * ow

    o_ref[...] = jnp.broadcast_to(b_ref[...], o_ref.shape)   # bias-initialised
    for ih in range(kh):
        h0 = oh0 * stride + ih * dilation
        for iw in range(kw):
            w0 = iw * dilation
            if stride == 1:
                tap = x_ref[pl.ds(h0, toh), w0:w0 + ow, :]          # (TOH,OW,C)
            else:
                tap = x_ref[pl.ds(h0, toh, stride),
                            pl.ds(w0, ow, stride), :]
            a = tap.reshape(tm, c).astype(compute_dtype)            # (TM, C)
            o_ref[...] += jnp.dot(a, w_ref[ih * kw + iw],
                                  preferred_element_type=jnp.float32)


# ------------------------------ forward wrapper ------------------------------

@functools.partial(jax.jit, static_argnames=("stride", "padding", "dilation",
                                              "compute_dtype", "fold_taps",
                                              "allow_xla_fallback"))
def prob_conv2d_forward(x, c_weight, c_bias, *, stride=1, padding=0, dilation=1,
                        compute_dtype=jnp.float32, fold_taps=None,
                        allow_xla_fallback=False):
    """x: (N,C,H,W) f32, c_weight: (OC,C,KH,KW), c_bias: (OC,) -> (N,OC,OH,OW)."""
    N, C, H, W = x.shape
    OC, _, KH, KW = c_weight.shape
    OH = (H + 2 * padding - dilation * (KH - 1) - 1) // stride + 1
    OW = (W + 2 * padding - dilation * (KW - 1) - 1) // stride + 1

    # Dispatch guard (review): tiny C *and* OC layers waste >90% of the lanes
    # (OC padded to 128) -- XLA's native conv wins there.  Opt-in so the Pallas
    # path is always exercisable.
    if allow_xla_fallback and C < 32 and OC < 32:
        out = jax.lax.conv_general_dilated(
            x, c_weight, (stride, stride), [(padding, padding)] * 2,
            rhs_dilation=(dilation, dilation),
            dimension_numbers=("NCHW", "OIHW", "NCHW"))
        return out + c_bias.reshape(1, OC, 1, 1)

    if fold_taps is None:
        fold_taps = C < 128        # keep per-tap GEMMs only when K=C is deep

    OCp = _round_up(max(OC, 1), 128)            # lane-dense output channels
    w_itemsize = jnp.dtype(compute_dtype).itemsize

    # ---- Output-row tiling: TM = TOH*OW always a multiple of 8 (no whole-image
    # fallback), ~512 pixels per step, >=2 grid blocks when possible (v7x 2 TCs).
    q = 8 // math.gcd(OW, 8)                    # smallest TOH step with TM%8==0
    TOH = max(1, min(OH, 512 // max(OW, 1)))
    TOH = min(_round_up(TOH, q), _round_up(OH, q))
    if N * pl.cdiv(OH, TOH) < 2 and OH > q:     # give the 2nd TensorCore work
        TOH = _round_up(pl.cdiv(OH, 2), q)
    n_rb = pl.cdiv(OH, TOH)
    OH_pad = n_rb * TOH
    TM = TOH * OW

    # ---- NHWC + spatial zero padding (plus extra bottom rows so every row
    # block, including a ragged/padded last one, reads in-bounds zeros).
    Hp = H + 2 * padding
    Wp = W + 2 * padding
    Hp_needed = (OH_pad - 1) * stride + (KH - 1) * dilation + 1
    extra_h = max(0, Hp_needed - Hp)
    x_p = jnp.pad(jnp.transpose(x, (0, 2, 3, 1)),
                  ((0, 0), (padding, padding + extra_h),
                   (padding, padding), (0, 0)))
    Hp2 = Hp + extra_h

    b_in = jnp.pad(c_bias.astype(jnp.float32), (0, OCp - OC)).reshape(1, OCp)

    if fold_taps:
        # Wrapper-side KW-fold ("im2col along W only", KWx input inflation):
        # x_in[n, h, ow, iw*C + c] = x_p[n, h, ow*stride + iw*dilation, c]
        KWC = KW * C
        cols = [x_p[:, :, iw * dilation:iw * dilation + (OW - 1) * stride + 1:stride, :]
                for iw in range(KW)]
        x_in = jnp.concatenate(cols, axis=-1)               # (N, Hp2, OW, KW*C)
        w_in = jnp.transpose(c_weight, (2, 3, 1, 0)).reshape(KH, KWC, OC)
        w_in = jnp.pad(w_in, ((0, 0), (0, 0), (0, OCp - OC))).astype(compute_dtype)
        x_spec = pl.BlockSpec((None, Hp2, OW, KWC), lambda n, r: (n, 0, 0, 0))
        w_spec = pl.BlockSpec((KH, KWC, OCp), lambda n, r: (0, 0, 0))
        kernel = functools.partial(_conv_kwfold_kernel, toh=TOH, ow=OW, kh=KH,
                                   kwc=KWC, stride=stride, dilation=dilation,
                                   compute_dtype=compute_dtype)
        k_depth = KWC
        x_vmem = Hp2 * _round_up(OW, 8) * _round_up(KWC, 128) * 4
        w_vmem = KH * _round_up(KWC, 8) * OCp * w_itemsize
    else:
        x_in = x_p
        w_in = jnp.transpose(c_weight, (2, 3, 1, 0)).reshape(KH * KW, C, OC)
        w_in = jnp.pad(w_in, ((0, 0), (0, 0), (0, OCp - OC))).astype(compute_dtype)
        x_spec = pl.BlockSpec((None, Hp2, Wp, C), lambda n, r: (n, 0, 0, 0))
        w_spec = pl.BlockSpec((KH * KW, C, OCp), lambda n, r: (0, 0, 0))
        kernel = functools.partial(_conv_per_tap_kernel, toh=TOH, ow=OW, kh=KH,
                                   kw=KW, c=C, stride=stride, dilation=dilation,
                                   compute_dtype=compute_dtype)
        k_depth = C
        x_vmem = Hp2 * _round_up(Wp, 8) * _round_up(C, 128) * 4
        w_vmem = KH * KW * _round_up(C, 8) * OCp * w_itemsize

    # ---- VMEM budget: lane/sublane-padding aware, derived from chip capacity.
    o_vmem = TM * OCp * 4
    b_vmem = 8 * OCp * 4
    lhs_vmem = 2 * TM * _round_up(k_depth, 128) * 4       # in-kernel LHS temps
    vmem_need = 2 * (x_vmem + w_vmem + b_vmem + o_vmem) + lhs_vmem + o_vmem
    try:
        vmem_cap = int(pltpu.get_tpu_info().vmem_capacity_bytes)
    except Exception:
        vmem_cap = 64 * 1024 * 1024             # conservative (v7x per-TC size)
    vmem_limit = int(min(int(0.75 * vmem_cap),
                         max(8 * 1024 * 1024, int(1.5 * vmem_need))))

    flops = 2 * N * OH_pad * OW * KH * KW * C * OCp
    bytes_accessed = int(4 * x_in.size + w_itemsize * w_in.size + 4 * OCp
                         + 4 * N * OH_pad * OW * OCp)

    out = pl.pallas_call(
        kernel,
        out_shape=jax.ShapeDtypeStruct((N, OH_pad * OW, OCp), jnp.float32),
        grid_spec=pltpu.PrefetchScalarGridSpec(
            num_scalar_prefetch=0,
            grid=(N, n_rb),
            in_specs=[
                # Full folded/padded image per batch element; constant over r so
                # it is DMA'd once per image (block revisiting).
                x_spec,
                w_spec,
                pl.BlockSpec((1, OCp), lambda n, r: (0, 0)),
            ],
            out_specs=pl.BlockSpec((None, TM, OCp), lambda n, r: (n, r, 0)),
        ),
        compiler_params=pltpu.CompilerParams(
            dimension_semantics=("parallel", "parallel"),
            vmem_limit_bytes=vmem_limit),
        cost_estimate=pl.CostEstimate(flops=flops, transcendentals=0,
                                      bytes_accessed=bytes_accessed),
    )(x_in, w_in, b_in)

    out = out.reshape(N, OH_pad, OW, OCp)[:, :OH, :, :OC]
    return jnp.transpose(out, (0, 3, 1, 2))      # back to NCHW


# ------------------------------ module wrapper -------------------------------

class ProbConv2dPallas:
    """JAX/Pallas port of ProbConv2d (Gaussian posterior/prior, groups=1)."""
    # TODO(synk): prior_dist='laplace' variant not implemented (gaussian only).

    def __init__(self, in_channels, out_channels, kernel_size, rho_prior,
                 stride=1, padding=0, dilation=1, key=None,
                 compute_dtype=jnp.float32):
        if key is None:
            key = jax.random.PRNGKey(0)
        self.in_channels = in_channels
        self.out_channels = out_channels
        self.kernel_size = (kernel_size, kernel_size)
        self.stride = stride
        self.padding = padding
        self.dilation = dilation
        self.compute_dtype = compute_dtype

        in_features = in_channels * kernel_size * kernel_size
        sigma_w = 1.0 / math.sqrt(in_features)

        k_mu, k_eps_w, k_eps_b = jax.random.split(key, 3)
        w_shape = (out_channels, in_channels, kernel_size, kernel_size)
        # trunc_normal_(mean=0, std=sigma_w, a=-2*sigma_w, b=2*sigma_w)
        weights_mu = sigma_w * jax.random.truncated_normal(
            k_mu, -2.0, 2.0, w_shape, dtype=jnp.float32)
        bias_mu = jnp.zeros((out_channels,), jnp.float32)
        weights_rho = jnp.full(w_shape, rho_prior, jnp.float32)
        bias_rho = jnp.full((out_channels,), rho_prior, jnp.float32)

        # posterior params (prior shares mu/rho: init_prior='weights')
        self.weight_mu, self.weight_rho = weights_mu, weights_rho
        self.bias_mu, self.bias_rho = bias_mu, bias_rho
        self.weight_mu_prior, self.weight_rho_prior = weights_mu, weights_rho
        self.bias_mu_prior, self.bias_rho_prior = bias_mu, bias_rho

        # sample() at construction time, exactly like the PyTorch __init__.
        eps_w = jax.random.normal(k_eps_w, w_shape, jnp.float32)
        eps_b = jax.random.normal(k_eps_b, (out_channels,), jnp.float32)
        self.c_weight = weights_mu + jax.nn.softplus(weights_rho) * eps_w
        self.c_bias = bias_mu + jax.nn.softplus(bias_rho) * eps_b
        self.kl_div = 0.0

    def sample(self, key):
        k_w, k_b = jax.random.split(key)
        eps_w = jax.random.normal(k_w, self.weight_mu.shape, jnp.float32)
        eps_b = jax.random.normal(k_b, self.bias_mu.shape, jnp.float32)
        self.c_weight = self.weight_mu + jax.nn.softplus(self.weight_rho) * eps_w
        self.c_bias = self.bias_mu + jax.nn.softplus(self.bias_rho) * eps_b

    def posterior(self):
        self.c_weight = self.weight_mu
        self.c_bias = self.bias_mu

    @staticmethod
    def _gauss_kl(mu_q, rho_q, mu_p, rho_p):
        s_q2 = jax.nn.softplus(rho_q) ** 2
        s_p2 = jax.nn.softplus(rho_p) ** 2
        term1 = jnp.log(s_p2 / s_q2)
        term2 = (mu_q - mu_p) ** 2 / s_p2
        term3 = s_q2 / s_p2
        return 0.5 * jnp.sum(term1 + term2 + term3 - 1.0)

    def __call__(self, x, training=True):
        if training:
            # Tiny scalar reduction, computed eagerly in plain JAX (mirrors the
            # PyTorch attribute side effect).
            self.kl_div = (
                self._gauss_kl(self.weight_mu, self.weight_rho,
                               self.weight_mu_prior, self.weight_rho_prior)
                + self._gauss_kl(self.bias_mu, self.bias_rho,
                                 self.bias_mu_prior, self.bias_rho_prior))
        return prob_conv2d_forward(
            x, self.c_weight, self.c_bias,
            stride=self.stride, padding=self.padding, dilation=self.dilation,
            compute_dtype=self.compute_dtype)


# --------------------------------- main -------------------------------------

if __name__ == "__main__":
    key = jax.random.PRNGKey(0)
    k_x, k_layer = jax.random.split(key)

    N, C, H, W = 2, 4, 16, 16
    OC, KS = 8, 3
    x = jax.random.normal(k_x, (N, C, H, W), dtype=jnp.float32)

    layer = ProbConv2dPallas(
        in_channels=C, out_channels=OC, kernel_size=KS,
        rho_prior=-3.0, stride=1, padding=1, dilation=1, key=k_layer)

    out = jax.block_until_ready(layer(x, training=True))
    assert out.shape == (N, OC, H, W), out.shape
    _ = jax.block_until_ready(jnp.asarray(layer.kl_div))

    # reference check against XLA's conv
    ref = jax.lax.conv_general_dilated(
        x, layer.c_weight, window_strides=(1, 1), padding=[(1, 1), (1, 1)],
        rhs_dilation=(1, 1), dimension_numbers=("NCHW", "OIHW", "NCHW"))
    ref = ref + layer.c_bias.reshape(1, OC, 1, 1)
    assert jnp.allclose(out, ref, atol=1e-3, rtol=1e-3), \
        float(jnp.max(jnp.abs(out - ref)))

    # also exercise the per-tap (large-C style) kernel path on the same data
    out_pt = prob_conv2d_forward(
        x, layer.c_weight, layer.c_bias, stride=1, padding=1, dilation=1,
        fold_taps=False)
    out_pt = jax.block_until_ready(out_pt)
    assert jnp.allclose(out_pt, ref, atol=1e-3, rtol=1e-3), \
        float(jnp.max(jnp.abs(out_pt - ref)))

    # bf16-operand path (v6e/v7x MXU lever), f32 accumulation, loose parity
    out_bf = prob_conv2d_forward(
        x, layer.c_weight, layer.c_bias, stride=1, padding=1, dilation=1,
        compute_dtype=jnp.bfloat16)
    out_bf = jax.block_until_ready(out_bf)
    assert float(jnp.max(jnp.abs(out_bf - ref))) < 0.2

    print("KERNEL_OK")
</pallas_src>

<mosaic_0001>
module attributes {stable_mosaic.version = 11 : i64} {
  func.func @_conv_kwfold_kernel(%arg0: i32, %arg1: i32, %arg2: memref<1x18x16x12xf32, #tpu.memory_space<vmem>>, %arg3: memref<3x12x128xf32, #tpu.memory_space<vmem>>, %arg4: memref<1x128xf32, #tpu.memory_space<vmem>>, %arg5: memref<1x256x128xf32, #tpu.memory_space<vmem>>) attributes {dimension_semantics = [#tpu.dimension_semantics<parallel>, #tpu.dimension_semantics<parallel>], iteration_bounds = array<i64: 2, 1>, scalar_prefetch = 0 : i64, scratch_operands = 0 : i64, tpu.core_type = #tpu.core_type<tc>, window_params = [{transform_indices = @transform_0, window_bounds = array<i64: 1, 18, 16, 12>}, {pipeline_mode = #tpu.pipeline_mode<synchronous>, transform_indices = @transform_1, window_bounds = array<i64: 3, 12, 128>}, {pipeline_mode = #tpu.pipeline_mode<synchronous>, transform_indices = @transform_2, window_bounds = array<i64: 1, 128>}, {transform_indices = @transform_3, window_bounds = array<i64: 1, 256, 128>}]} {
    %c16_i32 = arith.constant 16 : i32
    %0 = arith.muli %arg1, %c16_i32 : i32
    %c0 = arith.constant 0 : index
    %c0_0 = arith.constant 0 : index
    %1 = vector.load %arg4[%c0, %c0_0] : memref<1x128xf32, #tpu.memory_space<vmem>>, vector<1x128xf32>
    %2 = vector.shape_cast %1 : vector<1x128xf32> to vector<1x128xf32>
    %3 = vector.broadcast %2 : vector<1x128xf32> to vector<256x128xf32>
    %c0_1 = arith.constant 0 : index
    %c0_2 = arith.constant 0 : index
    %c0_3 = arith.constant 0 : index
    %4 = vector.load %arg5[%c0_1, %c0_2, %c0_3] : memref<1x256x128xf32, #tpu.memory_space<vmem>>, vector<1x256x128xf32>
    %5 = vector.shape_cast %4 : vector<1x256x128xf32> to vector<256x128xf32>
    %6 = vector.shape_cast %3 : vector<256x128xf32> to vector<1x256x128xf32>
    tpu.vector_store %arg5[%c0_1, %c0_2, %c0_3], %6 {strides = array<i32>} : memref<1x256x128xf32, #tpu.memory_space<vmem>>, vector<1x256x128xf32>,
    %c1_i32 = arith.constant 1 : i32
    %7 = arith.muli %0, %c1_i32 : i32
    %c0_i32 = arith.constant 0 : i32
    %8 = arith.addi %7, %c0_i32 : i32
    %c0_4 = arith.constant 0 : index
    %9 = arith.index_cast %8 : i32 to index
    %c0_5 = arith.constant 0 : index
    %c0_6 = arith.constant 0 : index
    %10 = vector.load %arg2[%c0_4, %9, %c0_5, %c0_6] : memref<1x18x16x12xf32, #tpu.memory_space<vmem>>, vector<1x16x16x12xf32>
    %11 = vector.shape_cast %10 : vector<1x16x16x12xf32> to vector<16x16x12xf32>
    %12 = vector.shape_cast %11 : vector<16x16x12xf32> to vector<256x12xf32>
    %c0_7 = arith.constant 0 : index
    %c0_8 = arith.constant 0 : index
    %c0_9 = arith.constant 0 : index
    %13 = vector.load %arg5[%c0_7, %c0_8, %c0_9] : memref<1x256x128xf32, #tpu.memory_space<vmem>>, vector<1x256x128xf32>
    %14 = vector.shape_cast %13 : vector<1x256x128xf32> to vector<256x128xf32>
    %c0_10 = arith.constant 0 : index
    %c0_11 = arith.constant 0 : index
    %c0_12 = arith.constant 0 : index
    %15 = vector.load %arg3[%c0_10, %c0_11, %c0_12] : memref<3x12x128xf32, #tpu.memory_space<vmem>>, vector<1x12x128xf32>
    %16 = vector.shape_cast %15 : vector<1x12x128xf32> to vector<12x128xf32>
    %cst = arith.constant dense<0.000000e+00> : vector<256x128xf32>
    %17 = tpu.matmul %12, %16, %cst {dimension_numbers = #tpu.dot_dimension_numbers<[1], [0], [0], [1], [0, 0, 1, 1], [], []>} : vector<256x12xf32>, vector<12x128xf32>, vector<256x128xf32> -> vector<256x128xf32>
    %18 = arith.addf %14, %17 : vector<256x128xf32>
    %c0_13 = arith.constant 0 : index
    %c0_14 = arith.constant 0 : index
    %c0_15 = arith.constant 0 : index
    %19 = vector.load %arg5[%c0_13, %c0_14, %c0_15] : memref<1x256x128xf32, #tpu.memory_space<vmem>>, vector<1x256x128xf32>
    %20 = vector.shape_cast %19 : vector<1x256x128xf32> to vector<256x128xf32>
    %21 = vector.shape_cast %18 : vector<256x128xf32> to vector<1x256x128xf32>
    tpu.vector_store %arg5[%c0_13, %c0_14, %c0_15], %21 {strides = array<i32>} : memref<1x256x128xf32, #tpu.memory_space<vmem>>, vector<1x256x128xf32>,
    %c1_i32_16 = arith.constant 1 : i32
    %22 = arith.muli %0, %c1_i32_16 : i32
    %c1_i32_17 = arith.constant 1 : i32
    %23 = arith.addi %22, %c1_i32_17 : i32
    %c0_18 = arith.constant 0 : index
    %24 = arith.index_cast %23 : i32 to index
    %c0_19 = arith.constant 0 : index
    %c0_20 = arith.constant 0 : index
    %25 = vector.load %arg2[%c0_18, %24, %c0_19, %c0_20] : memref<1x18x16x12xf32, #tpu.memory_space<vmem>>, vector<1x16x16x12xf32>
    %26 = vector.shape_cast %25 : vector<1x16x16x12xf32> to vector<16x16x12xf32>
    %27 = vector.shape_cast %26 : vector<16x16x12xf32> to vector<256x12xf32>
    %c0_21 = arith.constant 0 : index
    %c0_22 = arith.constant 0 : index
    %c0_23 = arith.constant 0 : index
    %28 = vector.load %arg5[%c0_21, %c0_22, %c0_23] : memref<1x256x128xf32, #tpu.memory_space<vmem>>, vector<1x256x128xf32>
    %29 = vector.shape_cast %28 : vector<1x256x128xf32> to vector<256x128xf32>
    %c1 = arith.constant 1 : index
    %c0_24 = arith.constant 0 : index
    %c0_25 = arith.constant 0 : index
    %30 = vector.load %arg3[%c1, %c0_24, %c0_25] : memref<3x12x128xf32, #tpu.memory_space<vmem>>, vector<1x12x128xf32>
    %31 = vector.shape_cast %30 : vector<1x12x128xf32> to vector<12x128xf32>
    %cst_26 = arith.constant dense<0.000000e+00> : vector<256x128xf32>
    %32 = tpu.matmul %27, %31, %cst_26 {dimension_numbers = #tpu.dot_dimension_numbers<[1], [0], [0], [1], [0, 0, 1, 1], [], []>} : vector<256x12xf32>, vector<12x128xf32>, vector<256x128xf32> -> vector<256x128xf32>
    %33 = arith.addf %29, %32 : vector<256x128xf32>
    %c0_27 = arith.constant 0 : index
    %c0_28 = arith.constant 0 : index
    %c0_29 = arith.constant 0 : index
    %34 = vector.load %arg5[%c0_27, %c0_28, %c0_29] : memref<1x256x128xf32, #tpu.memory_space<vmem>>, vector<1x256x128xf32>
    %35 = vector.shape_cast %34 : vector<1x256x128xf32> to vector<256x128xf32>
    %36 = vector.shape_cast %33 : vector<256x128xf32> to vector<1x256x128xf32>
    tpu.vector_store %arg5[%c0_27, %c0_28, %c0_29], %36 {strides = array<i32>} : memref<1x256x128xf32, #tpu.memory_space<vmem>>, vector<1x256x128xf32>,
    %c1_i32_30 = arith.constant 1 : i32
    %37 = arith.muli %0, %c1_i32_30 : i32
    %c2_i32 = arith.constant 2 : i32
    %38 = arith.addi %37, %c2_i32 : i32
    %c0_31 = arith.constant 0 : index
    %39 = arith.index_cast %38 : i32 to index
    %c0_32 = arith.constant 0 : index
    %c0_33 = arith.constant 0 : index
    %40 = vector.load %arg2[%c0_31, %39, %c0_32, %c0_33] : memref<1x18x16x12xf32, #tpu.memory_space<vmem>>, vector<1x16x16x12xf32>
    %41 = vector.shape_cast %40 : vector<1x16x16x12xf32> to vector<16x16x12xf32>
    %42 = vector.shape_cast %41 : vector<16x16x12xf32> to vector<256x12xf32>
    %c0_34 = arith.constant 0 : index
    %c0_35 = arith.constant 0 : index
    %c0_36 = arith.constant 0 : index
    %43 = vector.load %arg5[%c0_34, %c0_35, %c0_36] : memref<1x256x128xf32, #tpu.memory_space<vmem>>, vector<1x256x128xf32>
    %44 = vector.shape_cast %43 : vector<1x256x128xf32> to vector<256x128xf32>
    %c2 = arith.constant 2 : index
    %c0_37 = arith.constant 0 : index
    %c0_38 = arith.constant 0 : index
    %45 = vector.load %arg3[%c2, %c0_37, %c0_38] : memref<3x12x128xf32, #tpu.memory_space<vmem>>, vector<1x12x128xf32>
    %46 = vector.shape_cast %45 : vector<1x12x128xf32> to vector<12x128xf32>
    %cst_39 = arith.constant dense<0.000000e+00> : vector<256x128xf32>
    %47 = tpu.matmul %42, %46, %cst_39 {dimension_numbers = #tpu.dot_dimension_numbers<[1], [0], [0], [1], [0, 0, 1, 1], [], []>} : vector<256x12xf32>, vector<12x128xf32>, vector<256x128xf32> -> vector<256x128xf32>
    %48 = arith.addf %44, %47 : vector<256x128xf32>
    %c0_40 = arith.constant 0 : index
    %c0_41 = arith.constant 0 : index
    %c0_42 = arith.constant 0 : index
    %49 = vector.load %arg5[%c0_40, %c0_41, %c0_42] : memref<1x256x128xf32, #tpu.memory_space<vmem>>, vector<1x256x128xf32>
    %50 = vector.shape_cast %49 : vector<1x256x128xf32> to vector<256x128xf32>
    %51 = vector.shape_cast %48 : vector<256x128xf32> to vector<1x256x128xf32>
    tpu.vector_store %arg5[%c0_40, %c0_41, %c0_42], %51 {strides = array<i32>} : memref<1x256x128xf32, #tpu.memory_space<vmem>>, vector<1x256x128xf32>,
    return
  }
  func.func @transform_0(%arg0: i32, %arg1: i32) -> (i32, i32, i32, i32) {
    %c0_i32 = arith.constant 0 : i32
    %c0_i32_0 = arith.constant 0 : i32
    %c0_i32_1 = arith.constant 0 : i32
    %c0_i32_2 = arith.constant 0 : i32
    return %arg0, %c0_i32, %c0_i32_0, %c0_i32_1 : i32, i32, i32, i32
  }
  func.func @transform_1(%arg0: i32, %arg1: i32) -> (i32, i32, i32) {
    %c0_i32 = arith.constant 0 : i32
    %c0_i32_0 = arith.constant 0 : i32
    %c0_i32_1 = arith.constant 0 : i32
    %c0_i32_2 = arith.constant 0 : i32
    return %c0_i32, %c0_i32_0, %c0_i32_1 : i32, i32, i32
  }
  func.func @transform_2(%arg0: i32, %arg1: i32) -> (i32, i32) {
    %c0_i32 = arith.constant 0 : i32
    %c0_i32_0 = arith.constant 0 : i32
    %c0_i32_1 = arith.constant 0 : i32
    return %c0_i32, %c0_i32_0 : i32, i32
  }
  func.func @transform_3(%arg0: i32, %arg1: i32) -> (i32, i32, i32) {
    %c0_i32 = arith.constant 0 : i32
    %c0_i32_0 = arith.constant 0 : i32
    return %arg0, %arg1, %c0_i32 : i32, i32, i32
  }
}

</mosaic_0001>

<llo_original>
// kernel: prob_conv2d_forward.1
$region0: #{prob_conv2d_forward.1}
  #allocation0 [shape = 'u32[]', space=smem, size = 0x4, offset = 0x4, fixed_abs, tag = 'smem constant byte address 0x4 - core index']
  #allocation1 [shape = 'u32[72,128]{1,0:T(1,128)}', space=vmem, size = 0x9000, scoped, tag = 'internal scratch']
  %s0 = inlined_call_operand.vmem [shape: f32[2,18,16,12], index: 0, kind: input, shape index: {}]
  %s1 = inlined_call_operand.vmem [shape: f32[3,12,128], index: 1, kind: input, shape index: {}]
  %s2 = inlined_call_operand.vmem [shape: f32[1,128], index: 2, kind: input, shape index: {}]
  %s3 = inlined_call_operand.vmem [shape: f32[2,256,128], index: 3, kind: output, shape index: {}]
  %s4 = sld [smem:[#allocation0]]
  $region45: #{prob_conv2d_forward.1} parent=0
    _
  %s6 = ssub.s32 1, %s4
  %s7 = scalar_select 0, %s6, %s4
  loop: start=0, step=1, limit=4
  $region2: #{prob_conv2d_forward.1} parent=0 // loop_pre_header
    _
  $region3: #{prob_conv2d_forward.1} parent=0 // loop_header
    %s9 = sphi 0, %s13
    %p10 = scmp.ge.s32.totalorder %s9, 4
    %s16 = sphi 0, %s28
    %s17 = sphi 0, %s24
    %s18 = sphi 0, %s16
    %s19 = sphi 0, %s17
    %s20 = sphi 0, %s18
    %s21 = sphi 0, %s19
    %s31 = sphi 0, %s33
    %s34 = sphi 0, %s31
    %s35 = sphi 0, %s34
    %s51 = sphi 0, %s35
    %s55 = sphi 0, %s55
    %s57 = sphi 0, %s55
    %s58 = sphi 0, %s57
    %s72 = sphi 0, %s58
    %s76 = sphi 0, %s76
    %s78 = sphi 0, %s76
    %s79 = sphi 0, %s78
    %s93 = sphi 0, %s79
    %s101 = sphi 0, %s103
    %s104 = sphi 0, %s101
    %s105 = sphi 0, %s104
    %s121 = sphi 0, %s105
  $region4: #{prob_conv2d_forward.1} parent=0 // loop_header_branch
    %12 = sbr.rel (%p10) target = $region8
  $region5: #{prob_conv2d_forward.1} parent=0 // loop_body
    %s14 = ssub.s32 %s9, 1
    %s15 = ssub.s32 %s9, 2
    %s22 = sadd.s32 1, %s17
    %p23 = scmp.ge.s32.totalorder %s22, 1
    %s24 = scalar_select %p23, 0, %s22
    %s25 = sadd.s32 1, %s16
    %s26 = scalar_select %p23, %s25, %s16
    %p27 = scmp.ge.s32.totalorder %s26, 2
    %s28 = scalar_select %p27, 0, %s26
    %s29 = ssub.s32 %s16, %s28
    %p30 = scmp.eq.s32.totalorder %s29, 0
    %s32 = sadd.s32 %s31, 1
    %s33 = scalar_select %p30, %s31, %s32
    %p36 = pneg %p30
    %p37 = scmp.eq.s32.totalorder %s9, 1
    %p38 = por %p36, %p37
    %p39 = scmp.ne.s32.totalorder %s31, %s34
    %p40 = scmp.eq.s32.totalorder %s9, 0
    %p41 = por %p39, %p40
    %p42 = scmp.ne.s32.totalorder %s31, %s34
    %p43 = scmp.eq.s32.totalorder %s14, 1
    %p44 = por %p42, %p43
    %p45 = scmp.ne.s32.totalorder %s34, %s35
    %p46 = scmp.eq.s32.totalorder %s14, 0
    %p47 = por %p45, %p46
    %p48 = scmp.ne.s32.totalorder %s34, %s35
    %p49 = scmp.eq.s32.totalorder %s15, 1
    %p50 = por %p48, %p49
    %p52 = scmp.ne.s32.totalorder %s35, %s51
    %p53 = scmp.eq.s32.totalorder %s15, 0
    %p54 = por %p52, %p53
    %s56 = sadd.s32 %s55, 1
    %p59 = scmp.eq.s32.totalorder %s9, 1
    %p60 = scmp.ne.s32.totalorder %s55, %s57
    %p61 = scmp.eq.s32.totalorder %s9, 0
    %p62 = por %p60, %p61
    %p63 = scmp.ne.s32.totalorder %s55, %s57
    %p64 = scmp.eq.s32.totalorder %s14, 1
    %p65 = por %p63, %p64
    %p66 = scmp.ne.s32.totalorder %s57, %s58
    %p67 = scmp.eq.s32.totalorder %s14, 0
    %p68 = por %p66, %p67
    %p69 = scmp.ne.s32.totalorder %s57, %s58
    %p70 = scmp.eq.s32.totalorder %s15, 1
    %p71 = por %p69, %p70
    %p73 = scmp.ne.s32.totalorder %s58, %s72
    %p74 = scmp.eq.s32.totalorder %s15, 0
    %p75 = por %p73, %p74
    %s77 = sadd.s32 %s76, 1
    %p80 = scmp.eq.s32.totalorder %s9, 1
    %p81 = scmp.ne.s32.totalorder %s76, %s78
    %p82 = scmp.eq.s32.totalorder %s9, 0
    %p83 = por %p81, %p82
    %p84 = scmp.ne.s32.totalorder %s76, %s78
    %p85 = scmp.eq.s32.totalorder %s14, 1
    %p86 = por %p84, %p85
    %p87 = scmp.ne.s32.totalorder %s78, %s79
    %p88 = scmp.eq.s32.totalorder %s14, 0
    %p89 = por %p87, %p88
    %p90 = scmp.ne.s32.totalorder %s78, %s79
    %p91 = scmp.eq.s32.totalorder %s15, 1
    %p92 = por %p90, %p91
    %p94 = scmp.ne.s32.totalorder %s79, %s93
    %p95 = scmp.eq.s32.totalorder %s15, 0
    %p96 = por %p94, %p95
    %s97 = ssub.s32 %s16, %s28
    %s98 = ssub.s32 %s17, %s24
    %s99 = sor.u32 %s97, %s98
    %p100 = scmp.eq.s32.totalorder %s99, 0
    %s102 = sadd.s32 %s101, 1
    %s103 = scalar_select %p100, %s101, %s102
    %p106 = pneg %p100
    %p107 = scmp.eq.s32.totalorder %s9, 1
    %p108 = por %p106, %p107
    %p109 = scmp.ne.s32.totalorder %s101, %s104
    %p110 = scmp.eq.s32.totalorder %s9, 0
    %p111 = por %p109, %p110
    %p112 = scmp.ne.s32.totalorder %s101, %s104
    %p113 = scmp.eq.s32.totalorder %s14, 1
    %p114 = por %p112, %p113
    %p115 = scmp.ne.s32.totalorder %s104, %s105
    %p116 = scmp.eq.s32.totalorder %s14, 0
    %p117 = por %p115, %p116
    %p118 = scmp.ne.s32.totalorder %s104, %s105
    %p119 = scmp.eq.s32.totalorder %s15, 1
    %p120 = por %p118, %p119
    %p122 = scmp.ne.s32.totalorder %s105, %s121
    %p123 = scmp.eq.s32.totalorder %s15, 0
    %p124 = por %p122, %p123
    %p125 = scmp.le.s32.totalorder 1, %s9
    %p126 = scmp.lt.s32.totalorder %s9, 3
    %p127 = pnand %p125, %p126
    %p128 = pneg %p127
    // Predicated region
    $region9: #{prob_conv2d_forward.1} parent=5 // pred_check
      _
    $region10: #{prob_conv2d_forward.1} parent=5 // pred_check_branch
      %130 = sbr.rel (%p127) target = $region12
    $region11: #{prob_conv2d_forward.1} parent=5 // pred_region
      %s131 = ssub.s32 %s9, 1
      // Predicated region
      $region13: #{prob_conv2d_forward.1} parent=11 // pred_check
        %p132 = pneg %p68
      $region14: #{prob_conv2d_forward.1} parent=11 // pred_check_branch
        %134 = sbr.rel (%p132) target = $region16
      $region15: #{prob_conv2d_forward.1} parent=11 // pred_region
        _
      $region16: #{prob_conv2d_forward.1} parent=11 // pred_fallthru
        _
      // Predicated region
      $region17: #{prob_conv2d_forward.1} parent=11 // pred_check
        %p135 = pneg %p89
      $region18: #{prob_conv2d_forward.1} parent=11 // pred_check_branch
        %137 = sbr.rel (%p135) target = $region20
      $region19: #{prob_conv2d_forward.1} parent=11 // pred_region
        _
      $region20: #{prob_conv2d_forward.1} parent=11 // pred_fallthru
        _
    $region12: #{prob_conv2d_forward.1} parent=5 // pred_fallthru
      _
    %p138 = scmp.lt.s32.totalorder %s9, 2
    // Predicated region
    $region21: #{prob_conv2d_forward.1} parent=5 // pred_check
      %p139 = pneg %p138
    $region22: #{prob_conv2d_forward.1} parent=5 // pred_check_branch
      %141 = sbr.rel (%p139) target = $region24
    $region23: #{prob_conv2d_forward.1} parent=5 // pred_region
      // Predicated region
      $region25: #{prob_conv2d_forward.1} parent=23 // pred_check
        %p142 = pneg %p41
      $region26: #{prob_conv2d_forward.1} parent=23 // pred_check_branch
        %144 = sbr.rel (%p142) target = $region28
      $region27: #{prob_conv2d_forward.1} parent=23 // pred_region
        %p145 = scmp.lt.s32.totalorder %s16, 1
        %s146 = scalar_select %p145, %s16, 1
        %s147 = smul.addr %s146, 36
        %s148 = smul.addr %s147, 8
        %s149 = scalar_lea.vmem %s0, %s148
      $region28: #{prob_conv2d_forward.1} parent=23 // pred_fallthru
        _
    $region24: #{prob_conv2d_forward.1} parent=5 // pred_fallthru
      _
    %p150 = scmp.le.s32.totalorder 1, %s9
    %p151 = scmp.lt.s32.totalorder %s9, 3
    %p152 = pnand %p150, %p151
    %p153 = pneg %p152
    // Predicated region
    $region29: #{prob_conv2d_forward.1} parent=5 // pred_check
      _
    $region30: #{prob_conv2d_forward.1} parent=5 // pred_check_branch
      %155 = sbr.rel (%p152) target = $region32
    $region31: #{prob_conv2d_forward.1} parent=5 // pred_region
      %s156 = ssub.s32 %s9, 1
      %p157 = scmp.lt.s32.totalorder %s18, 1
      %s158 = scalar_select %p157, %s18, 1
      %s159 = smul.addr %s158, 36
      %s160 = smul.addr %s159, 8
      %s161 = scalar_lea.vmem %s0, %s160
      %p162 = pneg %p47
      %p163 = pneg %p44
      %p164 = pneg %p68
      %p165 = pneg %p65
      %p166 = pneg %p89
      %p167 = pneg %p86
      %p168 = pneg %p117
      %p169 = pneg %p114
      %s170 = smul.u32 32, %s19
      %p171 = scmp.lt.s32.totalorder %s18, 1
      %s172 = scalar_select %p171, %s18, 1
      %p173 = scmp.lt.s32.totalorder %s170, 31
      %s174 = scalar_select %p173, %s170, 31
      %s175 = smul.addr %s172, 32
      %s176 = sadd.s32 %s174, %s175
      %s177 = smul.addr %s176, 8
      %s178 = scalar_lea.vmem %s3, %s177
      %p179 = scmp.lt.s32.totalorder %s18, 1
      %s180 = scalar_select %p179, %s18, 1
      %s181 = smul.addr %s180, 36
      %s182 = smul.addr %s181, 8
      %s183 = scalar_lea.vmem %s0, %s182
      %s184 = smul.u32 32, %s19
      %p185 = scmp.lt.s32.totalorder %s18, 1
      %s186 = scalar_select %p185, %s18, 1
      %p187 = scmp.lt.s32.totalorder %s184, 31
      %s188 = scalar_select %p187, %s184, 31
      %s189 = smul.addr %s186, 32
      %s190 = sadd.s32 %s188, %s189
      %s191 = smul.addr %s190, 8
      %s192 = scalar_lea.vmem %s3, %s191
      %s193 = smul.u32 32, %s19
      %s194 = smul.u32 %s19, 16
      %v195 = vld [vmem:[%s2] sm:$0x1]
      %v197 = vperm.slane %v195, 0
      %199 = vst [vmem:[%s192] sm:$0xff] %v197
      %200 = vst [vmem:[%s192 + $0x8] sm:$0xff] %v197
      %201 = vst [vmem:[%s192 + $0x10] sm:$0xff] %v197
      %202 = vst [vmem:[%s192 + $0x18] sm:$0xff] %v197
      %203 = vst [vmem:[%s192 + $0x20] sm:$0xff] %v197
      %204 = vst [vmem:[%s192 + $0x28] sm:$0xff] %v197
      %205 = vst [vmem:[%s192 + $0x30] sm:$0xff] %v197
      %206 = vst [vmem:[%s192 + $0x38] sm:$0xff] %v197
      %207 = vst [vmem:[%s192 + $0x40] sm:$0xff] %v197
      %208 = vst [vmem:[%s192 + $0x48] sm:$0xff] %v197
      %209 = vst [vmem:[%s192 + $0x50] sm:$0xff] %v197
      %210 = vst [vmem:[%s192 + $0x58] sm:$0xff] %v197
      %211 = vst [vmem:[%s192 + $0x60] sm:$0xff] %v197
      %212 = vst [vmem:[%s192 + $0x68] sm:$0xff] %v197
      %213 = vst [vmem:[%s192 + $0x70] sm:$0xff] %v197
      %214 = vst [vmem:[%s192 + $0x78] sm:$0xff] %v197
      %215 = vst [vmem:[%s192 + $0x80] sm:$0xff] %v197
      %216 = vst [vmem:[%s192 + $0x88] sm:$0xff] %v197
      %217 = vst [vmem:[%s192 + $0x90] sm:$0xff] %v197
      %218 = vst [vmem:[%s192 + $0x98] sm:$0xff] %v197
      %219 = vst [vmem:[%s192 + $0xa0] sm:$0xff] %v197
      %220 = vst [vmem:[%s192 + $0xa8] sm:$0xff] %v197
      %221 = vst [vmem:[%s192 + $0xb0] sm:$0xff] %v197
      %222 = vst [vmem:[%s192 + $0xb8] sm:$0xff] %v197
      %223 = vst [vmem:[%s192 + $0xc0] sm:$0xff] %v197
      %224 = vst [vmem:[%s192 + $0xc8] sm:$0xff] %v197
      %225 = vst [vmem:[%s192 + $0xd0] sm:$0xff] %v197
      %226 = vst [vmem:[%s192 + $0xd8] sm:$0xff] %v197
      %227 = vst [vmem:[%s192 + $0xe0] sm:$0xff] %v197
      %228 = vst [vmem:[%s192 + $0xe8] sm:$0xff] %v197
      %229 = vst [vmem:[%s192 + $0xf0] sm:$0xff] %v197
      %230 = vst [vmem:[%s192 + $0xf8] sm:$0xff] %v197
      %s231 = smul.u32 %s194, 16
      %s232 = scalar_lea.vmem %s183, %s231
      %v233 = vld [vmem:[%s232] sm:$0xff]
      %v234 = vld [vmem:[%s232 + $0x8] sm:$0xff]
      %v235 = vld [vmem:[%s232 + $0x10] sm:$0xff]
      %v236 = vld [vmem:[%s232 + $0x18] sm:$0xff]
      %v237 = vld [vmem:[%s232 + $0x20] sm:$0xff]
      %v238 = vld [vmem:[%s232 + $0x28] sm:$0xff]
      %v239 = vld [vmem:[%s232 + $0x30] sm:$0xff]
      %v240 = vld [vmem:[%s232 + $0x38] sm:$0xff]
      %v241 = vld [vmem:[%s232 + $0x40] sm:$0xff]
      %v242 = vld [vmem:[%s232 + $0x48] sm:$0xff]
      %v243 = vld [vmem:[%s232 + $0x50] sm:$0xff]
      %v244 = vld [vmem:[%s232 + $0x58] sm:$0xff]
      %v245 = vld [vmem:[%s232 + $0x60] sm:$0xff]
      %v246 = vld [vmem:[%s232 + $0x68] sm:$0xff]
      %v247 = vld [vmem:[%s232 + $0x70] sm:$0xff]
      %v248 = vld [vmem:[%s232 + $0x78] sm:$0xff]
      %v249 = vld [vmem:[%s232 + $0x80] sm:$0xff]
      %v250 = vld [vmem:[%s232 + $0x88] sm:$0xff]
      %v251 = vld [vmem:[%s232 + $0x90] sm:$0xff]
      %v252 = vld [vmem:[%s232 + $0x98] sm:$0xff]
      %v253 = vld [vmem:[%s232 + $0xa0] sm:$0xff]
      %v254 = vld [vmem:[%s232 + $0xa8] sm:$0xff]
      %v255 = vld [vmem:[%s232 + $0xb0] sm:$0xff]
      %v256 = vld [vmem:[%s232 + $0xb8] sm:$0xff]
      %v257 = vld [vmem:[%s232 + $0xc0] sm:$0xff]
      %v258 = vld [vmem:[%s232 + $0xc8] sm:$0xff]
      %v259 = vld [vmem:[%s232 + $0xd0] sm:$0xff]
      %v260 = vld [vmem:[%s232 + $0xd8] sm:$0xff]
      %v261 = vld [vmem:[%s232 + $0xe0] sm:$0xff]
      %v262 = vld [vmem:[%s232 + $0xe8] sm:$0xff]
      %v263 = vld [vmem:[%s232 + $0xf0] sm:$0xff]
      %v264 = vld [vmem:[%s232 + $0xf8] sm:$0xff]
      %v265 = vld [vmem:[%s192] sm:$0xff]
      %v266 = vld [vmem:[%s192 + $0x8] sm:$0xff]
      %v267 = vld [vmem:[%s192 + $0x10] sm:$0xff]
      %v268 = vld [vmem:[%s192 + $0x18] sm:$0xff]
      %v269 = vld [vmem:[%s192 + $0x20] sm:$0xff]
      %v270 = vld [vmem:[%s192 + $0x28] sm:$0xff]
      %v271 = vld [vmem:[%s192 + $0x30] sm:$0xff]
      %v272 = vld [vmem:[%s192 + $0x38] sm:$0xff]
      %v273 = vld [vmem:[%s192 + $0x40] sm:$0xff]
      %v274 = vld [vmem:[%s192 + $0x48] sm:$0xff]
      %v275 = vld [vmem:[%s192 + $0x50] sm:$0xff]
      %v276 = vld [vmem:[%s192 + $0x58] sm:$0xff]
      %v277 = vld [vmem:[%s192 + $0x60] sm:$0xff]
      %v278 = vld [vmem:[%s192 + $0x68] sm:$0xff]
      %v279 = vld [vmem:[%s192 + $0x70] sm:$0xff]
      %v280 = vld [vmem:[%s192 + $0x78] sm:$0xff]
      %v281 = vld [vmem:[%s192 + $0x80] sm:$0xff]
      %v282 = vld [vmem:[%s192 + $0x88] sm:$0xff]
      %v283 = vld [vmem:[%s192 + $0x90] sm:$0xff]
      %v284 = vld [vmem:[%s192 + $0x98] sm:$0xff]
      %v285 = vld [vmem:[%s192 + $0xa0] sm:$0xff]
      %v286 = vld [vmem:[%s192 + $0xa8] sm:$0xff]
      %v287 = vld [vmem:[%s192 + $0xb0] sm:$0xff]
      %v288 = vld [vmem:[%s192 + $0xb8] sm:$0xff]
      %v289 = vld [vmem:[%s192 + $0xc0] sm:$0xff]
      %v290 = vld [vmem:[%s192 + $0xc8] sm:$0xff]
      %v291 = vld [vmem:[%s192 + $0xd0] sm:$0xff]
      %v292 = vld [vmem:[%s192 + $0xd8] sm:$0xff]
      %v293 = vld [vmem:[%s192 + $0xe0] sm:$0xff]
      %v294 = vld [vmem:[%s192 + $0xe8] sm:$0xff]
      %v295 = vld [vmem:[%s192 + $0xf0] sm:$0xff]
      %v296 = vld [vmem:[%s192 + $0xf8] sm:$0xff]
      %v297 = vld [vmem:[%s1] sm:$0xff]
      %v298 = vld [vmem:[%s1 + $0x8] sm:$0xf]
      %vm299 = vcmask 97280
      %v301 = vsel %vm299, %v233, 0
      %v304 = vsel %vm299, %v234, 0
      %v307 = vsel %vm299, %v235, 0
      %v310 = vsel %vm299, %v236, 0
      %v313 = vsel %vm299, %v237, 0
      %v316 = vsel %vm299, %v238, 0
      %v319 = vsel %vm299, %v239, 0
      %v322 = vsel %vm299, %v240, 0
      %v325 = vsel %vm299, %v241, 0
      %v328 = vsel %vm299, %v242, 0
      %v331 = vsel %vm299, %v243, 0
      %v334 = vsel %vm299, %v244, 0
      %v337 = vsel %vm299, %v245, 0
      %v340 = vsel %vm299, %v246, 0
      %v343 = vsel %vm299, %v247, 0
      %v346 = vsel %vm299, %v248, 0
      %v349 = vsel %vm299, %v249, 0
      %v352 = vsel %vm299, %v250, 0
      %v355 = vsel %vm299, %v251, 0
      %v358 = vsel %vm299, %v252, 0
      %v361 = vsel %vm299, %v253, 0
      %v364 = vsel %vm299, %v254, 0
      %v367 = vsel %vm299, %v255, 0
      %v370 = vsel %vm299, %v256, 0
      %v373 = vsel %vm299, %v257, 0
      %v376 = vsel %vm299, %v258, 0
      %v379 = vsel %vm299, %v259, 0
      %v382 = vsel %vm299, %v260, 0
      %v385 = vsel %vm299, %v261, 0
      %v388 = vsel %vm299, %v262, 0
      %v391 = vsel %vm299, %v263, 0
      %v394 = vsel %vm299, %v264, 0
      %vm396 = vcmask 1043456
      %v398 = vsel %vm396, %v298, 0
      %400 = vmatpush.msra.mxu0 0.0
      %401 = vmatpush.msra.mxu0 0.0
      %402 = vmatpush.msra.mxu0 0.0
      %403 = vmatpush.msra.mxu0 0.0
      %404 = vmatpush.msra.mxu0 0.0
      %405 = vmatpush.msra.mxu0 0.0
      %406 = vmatpush.msra.mxu0 0.0
      %407 = vmatpush.msra.mxu0 0.0
      %408 = vmatpush.msra.mxu0 0.0
      %409 = vmatpush.msra.mxu0 0.0
      %410 = vmatpush.msra.mxu0 0.0
      %411 = vmatpush.msra.mxu0 0.0
      %412 = vmatpush.msra.mxu0 0.0
      %413 = vmatpush.msra.mxu0 0.0
      %414 = vmatpush.msra.mxu0 %v398
      %415 = vmatpush.msra.mxu0 %v297
      %416 = vmatmul.f32.gmra.mxu0 %v301
      %v417 = vpop.f32.mrf.mxu0
      %v418 = vadd.f32 0.0, %v417
      %419 = vmatmul.f32.gmra.mxu0 %v304
      %v420 = vpop.f32.mrf.mxu0
      %v421 = vadd.f32 0.0, %v420
      %422 = vmatmul.f32.gmra.mxu0 %v307
      %v423 = vpop.f32.mrf.mxu0
      %v424 = vadd.f32 0.0, %v423
      %425 = vmatmul.f32.gmra.mxu0 %v310
      %v426 = vpop.f32.mrf.mxu0
      %v427 = vadd.f32 0.0, %v426
      %428 = vmatmul.f32.gmra.mxu0 %v313
      %v429 = vpop.f32.mrf.mxu0
      %v430 = vadd.f32 0.0, %v429
      %431 = vmatmul.f32.gmra.mxu0 %v316
      %v432 = vpop.f32.mrf.mxu0
      %v433 = vadd.f32 0.0, %v432
      %434 = vmatmul.f32.gmra.mxu0 %v319
      %v435 = vpop.f32.mrf.mxu0
      %v436 = vadd.f32 0.0, %v435
      %437 = vmatmul.f32.gmra.mxu0 %v322
      %v438 = vpop.f32.mrf.mxu0
      %v439 = vadd.f32 0.0, %v438
      %440 = vmatmul.f32.gmra.mxu0 %v325
      %v441 = vpop.f32.mrf.mxu0
      %v442 = vadd.f32 0.0, %v441
      %443 = vmatmul.f32.gmra.mxu0 %v328
      %v444 = vpop.f32.mrf.mxu0
      %v445 = vadd.f32 0.0, %v444
      %446 = vmatmul.f32.gmra.mxu0 %v331
      %v447 = vpop.f32.mrf.mxu0
      %v448 = vadd.f32 0.0, %v447
      %449 = vmatmul.f32.gmra.mxu0 %v334
      %v450 = vpop.f32.mrf.mxu0
      %v451 = vadd.f32 0.0, %v450
      %452 = vmatmul.f32.gmra.mxu0 %v337
      %v453 = vpop.f32.mrf.mxu0
      %v454 = vadd.f32 0.0, %v453
      %455 = vmatmul.f32.gmra.mxu0 %v340
      %v456 = vpop.f32.mrf.mxu0
      %v457 = vadd.f32 0.0, %v456
      %458 = vmatmul.f32.gmra.mxu0 %v343
      %v459 = vpop.f32.mrf.mxu0
      %v460 = vadd.f32 0.0, %v459
      %461 = vmatmul.f32.gmra.mxu0 %v346
      %v462 = vpop.f32.mrf.mxu0
      %v463 = vadd.f32 0.0, %v462
      %464 = vmatmul.f32.gmra.mxu0 %v349
      %v465 = vpop.f32.mrf.mxu0
      %v466 = vadd.f32 0.0, %v465
      %467 = vmatmul.f32.gmra.mxu0 %v352
      %v468 = vpop.f32.mrf.mxu0
      %v469 = vadd.f32 0.0, %v468
      %470 = vmatmul.f32.gmra.mxu0 %v355
      %v471 = vpop.f32.mrf.mxu0
      %v472 = vadd.f32 0.0, %v471
      %473 = vmatmul.f32.gmra.mxu0 %v358
      %v474 = vpop.f32.mrf.mxu0
      %v475 = vadd.f32 0.0, %v474
      %476 = vmatmul.f32.gmra.mxu0 %v361
      %v477 = vpop.f32.mrf.mxu0
      %v478 = vadd.f32 0.0, %v477
      %479 = vmatmul.f32.gmra.mxu0 %v364
      %v480 = vpop.f32.mrf.mxu0
      %v481 = vadd.f32 0.0, %v480
      %482 = vmatmul.f32.gmra.mxu0 %v367
      %v483 = vpop.f32.mrf.mxu0
      %v484 = vadd.f32 0.0, %v483
      %485 = vmatmul.f32.gmra.mxu0 %v370
      %v486 = vpop.f32.mrf.mxu0
      %v487 = vadd.f32 0.0, %v486
      %488 = vmatmul.f32.gmra.mxu0 %v373
      %v489 = vpop.f32.mrf.mxu0
      %v490 = vadd.f32 0.0, %v489
      %491 = vmatmul.f32.gmra.mxu0 %v376
      %v492 = vpop.f32.mrf.mxu0
      %v493 = vadd.f32 0.0, %v492
      %494 = vmatmul.f32.gmra.mxu0 %v379
      %v495 = vpop.f32.mrf.mxu0
      %v496 = vadd.f32 0.0, %v495
      %497 = vmatmul.f32.gmra.mxu0 %v382
      %v498 = vpop.f32.mrf.mxu0
      %v499 = vadd.f32 0.0, %v498
      %500 = vmatmul.f32.gmra.mxu0 %v385
      %v501 = vpop.f32.mrf.mxu0
      %v502 = vadd.f32 0.0, %v501
      %503 = vmatmul.f32.gmra.mxu0 %v388
      %v504 = vpop.f32.mrf.mxu0
      %v505 = vadd.f32 0.0, %v504
      %506 = vmatmul.f32.gmra.mxu0 %v391
      %v507 = vpop.f32.mrf.mxu0
      %v508 = vadd.f32 0.0, %v507
      %509 = vmatmul.f32.gmra.mxu0 %v394
      %v510 = vpop.f32.mrf.mxu0
      %v511 = vadd.f32 0.0, %v510
      %512 = vdwg.mxu0
      %v513 = vadd.f32 %v265, %v418
      %v514 = vadd.f32 %v266, %v421
      %v515 = vadd.f32 %v267, %v424
      %v516 = vadd.f32 %v268, %v427
      %v517 = vadd.f32 %v269, %v430
      %v518 = vadd.f32 %v270, %v433
      %v519 = vadd.f32 %v271, %v436
      %v520 = vadd.f32 %v272, %v439
      %v521 = vadd.f32 %v273, %v442
      %v522 = vadd.f32 %v274, %v445
      %v523 = vadd.f32 %v275, %v448
      %v524 = vadd.f32 %v276, %v451
      %v525 = vadd.f32 %v277, %v454
      %v526 = vadd.f32 %v278, %v457
      %v527 = vadd.f32 %v279, %v460
      %v528 = vadd.f32 %v280, %v463
      %v529 = vadd.f32 %v281, %v466
      %v530 = vadd.f32 %v282, %v469
      %v531 = vadd.f32 %v283, %v472
      %v532 = vadd.f32 %v284, %v475
      %v533 = vadd.f32 %v285, %v478
      %v534 = vadd.f32 %v286, %v481
      %v535 = vadd.f32 %v287, %v484
      %v536 = vadd.f32 %v288, %v487
      %v537 = vadd.f32 %v289, %v490
      %v538 = vadd.f32 %v290, %v493
      %v539 = vadd.f32 %v291, %v496
      %v540 = vadd.f32 %v292, %v499
      %v541 = vadd.f32 %v293, %v502
      %v542 = vadd.f32 %v294, %v505
      %v543 = vadd.f32 %v295, %v508
      %v544 = vadd.f32 %v296, %v511
      %545 = vst [vmem:[%s192] sm:$0xff] %v513
      %546 = vst [vmem:[%s192 + $0x8] sm:$0xff] %v514
      %547 = vst [vmem:[%s192 + $0x10] sm:$0xff] %v515
      %548 = vst [vmem:[%s192 + $0x18] sm:$0xff] %v516
      %549 = vst [vmem:[%s192 + $0x20] sm:$0xff] %v517
      %550 = vst [vmem:[%s192 + $0x28] sm:$0xff] %v518
      %551 = vst [vmem:[%s192 + $0x30] sm:$0xff] %v519
      %552 = vst [vmem:[%s192 + $0x38] sm:$0xff] %v520
      %553 = vst [vmem:[%s192 + $0x40] sm:$0xff] %v521
      %554 = vst [vmem:[%s192 + $0x48] sm:$0xff] %v522
      %555 = vst [vmem:[%s192 + $0x50] sm:$0xff] %v523
      %556 = vst [vmem:[%s192 + $0x58] sm:$0xff] %v524
      %557 = vst [vmem:[%s192 + $0x60] sm:$0xff] %v525
      %558 = vst [vmem:[%s192 + $0x68] sm:$0xff] %v526
      %559 = vst [vmem:[%s192 + $0x70] sm:$0xff] %v527
      %560 = vst [vmem:[%s192 + $0x78] sm:$0xff] %v528
      %561 = vst [vmem:[%s192 + $0x80] sm:$0xff] %v529
      %562 = vst [vmem:[%s192 + $0x88] sm:$0xff] %v530
      %563 = vst [vmem:[%s192 + $0x90] sm:$0xff] %v531
      %564 = vst [vmem:[%s192 + $0x98] sm:$0xff] %v532
      %565 = vst [vmem:[%s192 + $0xa0] sm:$0xff] %v533
      %566 = vst [vmem:[%s192 + $0xa8] sm:$0xff] %v534
      %567 = vst [vmem:[%s192 + $0xb0] sm:$0xff] %v535
      %568 = vst [vmem:[%s192 + $0xb8] sm:$0xff] %v536
      %569 = vst [vmem:[%s192 + $0xc0] sm:$0xff] %v537
      %570 = vst [vmem:[%s192 + $0xc8] sm:$0xff] %v538
      %571 = vst [vmem:[%s192 + $0xd0] sm:$0xff] %v539
      %572 = vst [vmem:[%s192 + $0xd8] sm:$0xff] %v540
      %573 = vst [vmem:[%s192 + $0xe0] sm:$0xff] %v541
      %574 = vst [vmem:[%s192 + $0xe8] sm:$0xff] %v542
      %575 = vst [vmem:[%s192 + $0xf0] sm:$0xff] %v543
      %576 = vst [vmem:[%s192 + $0xf8] sm:$0xff] %v544
      %s577 = sadd.s32 %s194, 1
      %s578 = smul.u32 %s577, 16
      %s579 = scalar_lea.vmem %s183, %s578
      %v580 = vld [vmem:[%s579] sm:$0xff]
      %v581 = vld [vmem:[%s579 + $0x8] sm:$0xff]
      %v582 = vld [vmem:[%s579 + $0x10] sm:$0xff]
      %v583 = vld [vmem:[%s579 + $0x18] sm:$0xff]
      %v584 = vld [vmem:[%s579 + $0x20] sm:$0xff]
      %v585 = vld [vmem:[%s579 + $0x28] sm:$0xff]
      %v586 = vld [vmem:[%s579 + $0x30] sm:$0xff]
      %v587 = vld [vmem:[%s579 + $0x38] sm:$0xff]
      %v588 = vld [vmem:[%s579 + $0x40] sm:$0xff]
      %v589 = vld [vmem:[%s579 + $0x48] sm:$0xff]
      %v590 = vld [vmem:[%s579 + $0x50] sm:$0xff]
      %v591 = vld [vmem:[%s579 + $0x58] sm:$0xff]
      %v592 = vld [vmem:[%s579 + $0x60] sm:$0xff]
      %v593 = vld [vmem:[%s579 + $0x68] sm:$0xff]
      %v594 = vld [vmem:[%s579 + $0x70] sm:$0xff]
      %v595 = vld [vmem:[%s579 + $0x78] sm:$0xff]
      %v596 = vld [vmem:[%s579 + $0x80] sm:$0xff]
      %v597 = vld [vmem:[%s579 + $0x88] sm:$0xff]
      %v598 = vld [vmem:[%s579 + $0x90] sm:$0xff]
      %v599 = vld [vmem:[%s579 + $0x98] sm:$0xff]
      %v600 = vld [vmem:[%s579 + $0xa0] sm:$0xff]
      %v601 = vld [vmem:[%s579 + $0xa8] sm:$0xff]
      %v602 = vld [vmem:[%s579 + $0xb0] sm:$0xff]
      %v603 = vld [vmem:[%s579 + $0xb8] sm:$0xff]
      %v604 = vld [vmem:[%s579 + $0xc0] sm:$0xff]
      %v605 = vld [vmem:[%s579 + $0xc8] sm:$0xff]
      %v606 = vld [vmem:[%s579 + $0xd0] sm:$0xff]
      %v607 = vld [vmem:[%s579 + $0xd8] sm:$0xff]
      %v608 = vld [vmem:[%s579 + $0xe0] sm:$0xff]
      %v609 = vld [vmem:[%s579 + $0xe8] sm:$0xff]
      %v610 = vld [vmem:[%s579 + $0xf0] sm:$0xff]
      %v611 = vld [vmem:[%s579 + $0xf8] sm:$0xff]
      %v612 = vld [vmem:[%s192] sm:$0xff]
      %v613 = vld [vmem:[%s192 + $0x8] sm:$0xff]
      %v614 = vld [vmem:[%s192 + $0x10] sm:$0xff]
      %v615 = vld [vmem:[%s192 + $0x18] sm:$0xff]
      %v616 = vld [vmem:[%s192 + $0x20] sm:$0xff]
      %v617 = vld [vmem:[%s192 + $0x28] sm:$0xff]
      %v618 = vld [vmem:[%s192 + $0x30] sm:$0xff]
      %v619 = vld [vmem:[%s192 + $0x38] sm:$0xff]
      %v620 = vld [vmem:[%s192 + $0x40] sm:$0xff]
      %v621 = vld [vmem:[%s192 + $0x48] sm:$0xff]
      %v622 = vld [vmem:[%s192 + $0x50] sm:$0xff]
      %v623 = vld [vmem:[%s192 + $0x58] sm:$0xff]
      %v624 = vld [vmem:[%s192 + $0x60] sm:$0xff]
      %v625 = vld [vmem:[%s192 + $0x68] sm:$0xff]
      %v626 = vld [vmem:[%s192 + $0x70] sm:$0xff]
      %v627 = vld [vmem:[%s192 + $0x78] sm:$0xff]
      %v628 = vld [vmem:[%s192 + $0x80] sm:$0xff]
      %v629 = vld [vmem:[%s192 + $0x88] sm:$0xff]
      %v630 = vld [vmem:[%s192 + $0x90] sm:$0xff]
      %v631 = vld [vmem:[%s192 + $0x98] sm:$0xff]
      %v632 = vld [vmem:[%s192 + $0xa0] sm:$0xff]
      %v633 = vld [vmem:[%s192 + $0xa8] sm:$0xff]
      %v634 = vld [vmem:[%s192 + $0xb0] sm:$0xff]
      %v635 = vld [vmem:[%s192 + $0xb8] sm:$0xff]
      %v636 = vld [vmem:[%s192 + $0xc0] sm:$0xff]
      %v637 = vld [vmem:[%s192 + $0xc8] sm:$0xff]
      %v638 = vld [vmem:[%s192 + $0xd0] sm:$0xff]
      %v639 = vld [vmem:[%s192 + $0xd8] sm:$0xff]
      %v640 = vld [vmem:[%s192 + $0xe0] sm:$0xff]
      %v641 = vld [vmem:[%s192 + $0xe8] sm:$0xff]
      %v642 = vld [vmem:[%s192 + $0xf0] sm:$0xff]
      %v643 = vld [vmem:[%s192 + $0xf8] sm:$0xff]
      %s644 = scalar_lea.vmem %s1, 16
      %v645 = vld [vmem:[%s644] sm:$0xff]
      %v646 = vld [vmem:[%s644 + $0x8] sm:$0xf]
      %v648 = vsel %vm299, %v580, 0
      %v651 = vsel %vm299, %v581, 0
      %v654 = vsel %vm299, %v582, 0
      %v657 = vsel %vm299, %v583, 0
      %v660 = vsel %vm299, %v584, 0
      %v663 = vsel %vm299, %v585, 0
      %v666 = vsel %vm299, %v586, 0
      %v669 = vsel %vm299, %v587, 0
      %v672 = vsel %vm299, %v588, 0
      %v675 = vsel %vm299, %v589, 0
      %v678 = vsel %vm299, %v590, 0
      %v681 = vsel %vm299, %v591, 0
      %v684 = vsel %vm299, %v592, 0
      %v687 = vsel %vm299, %v593, 0
      %v690 = vsel %vm299, %v594, 0
      %v693 = vsel %vm299, %v595, 0
      %v696 = vsel %vm299, %v596, 0
      %v699 = vsel %vm299, %v597, 0
      %v702 = vsel %vm299, %v598, 0
      %v705 = vsel %vm299, %v599, 0
      %v708 = vsel %vm299, %v600, 0
      %v711 = vsel %vm299, %v601, 0
      %v714 = vsel %vm299, %v602, 0
      %v717 = vsel %vm299, %v603, 0
      %v720 = vsel %vm299, %v604, 0
      %v723 = vsel %vm299, %v605, 0
      %v726 = vsel %vm299, %v606, 0
      %v729 = vsel %vm299, %v607, 0
      %v732 = vsel %vm299, %v608, 0
      %v735 = vsel %vm299, %v609, 0
      %v738 = vsel %vm299, %v610, 0
      %v741 = vsel %vm299, %v611, 0
      %v744 = vsel %vm396, %v646, 0
      %746 = vmatpush.msra.mxu0 0.0
      %747 = vmatpush.msra.mxu0 0.0
      %748 = vmatpush.msra.mxu0 0.0
      %749 = vmatpush.msra.mxu0 0.0
      %750 = vmatpush.msra.mxu0 0.0
      %751 = vmatpush.msra.mxu0 0.0
      %752 = vmatpush.msra.mxu0 0.0
      %753 = vmatpush.msra.mxu0 0.0
      %754 = vmatpush.msra.mxu0 0.0
      %755 = vmatpush.msra.mxu0 0.0
      %756 = vmatpush.msra.mxu0 0.0
      %757 = vmatpush.msra.mxu0 0.0
      %758 = vmatpush.msra.mxu0 0.0
      %759 = vmatpush.msra.mxu0 0.0
      %760 = vmatpush.msra.mxu0 %v744
      %761 = vmatpush.msra.mxu0 %v645
      %762 = vmatmul.f32.gmra.mxu0 %v648
      %v763 = vpop.f32.mrf.mxu0
      %v764 = vadd.f32 0.0, %v763
      %765 = vmatmul.f32.gmra.mxu0 %v651
      %v766 = vpop.f32.mrf.mxu0
      %v767 = vadd.f32 0.0, %v766
      %768 = vmatmul.f32.gmra.mxu0 %v654
      %v769 = vpop.f32.mrf.mxu0
      %v770 = vadd.f32 0.0, %v769
      %771 = vmatmul.f32.gmra.mxu0 %v657
      %v772 = vpop.f32.mrf.mxu0
      %v773 = vadd.f32 0.0, %v772
      %774 = vmatmul.f32.gmra.mxu0 %v660
      %v775 = vpop.f32.mrf.mxu0
      %v776 = vadd.f32 0.0, %v775
      %777 = vmatmul.f32.gmra.mxu0 %v663
      %v778 = vpop.f32.mrf.mxu0
      %v779 = vadd.f32 0.0, %v778
      %780 = vmatmul.f32.gmra.mxu0 %v666
      %v781 = vpop.f32.mrf.mxu0
      %v782 = vadd.f32 0.0, %v781
      %783 = vmatmul.f32.gmra.mxu0 %v669
      %v784 = vpop.f32.mrf.mxu0
      %v785 = vadd.f32 0.0, %v784
      %786 = vmatmul.f32.gmra.mxu0 %v672
      %v787 = vpop.f32.mrf.mxu0
      %v788 = vadd.f32 0.0, %v787
      %789 = vmatmul.f32.gmra.mxu0 %v675
      %v790 = vpop.f32.mrf.mxu0
      %v791 = vadd.f32 0.0, %v790
      %792 = vmatmul.f32.gmra.mxu0 %v678
      %v793 = vpop.f32.mrf.mxu0
      %v794 = vadd.f32 0.0, %v793
      %795 = vmatmul.f32.gmra.mxu0 %v681
      %v796 = vpop.f32.mrf.mxu0
      %v797 = vadd.f32 0.0, %v796
      %798 = vmatmul.f32.gmra.mxu0 %v684
      %v799 = vpop.f32.mrf.mxu0
      %v800 = vadd.f32 0.0, %v799
      %801 = vmatmul.f32.gmra.mxu0 %v687
      %v802 = vpop.f32.mrf.mxu0
      %v803 = vadd.f32 0.0, %v802
      %804 = vmatmul.f32.gmra.mxu0 %v690
      %v805 = vpop.f32.mrf.mxu0
      %v806 = vadd.f32 0.0, %v805
      %807 = vmatmul.f32.gmra.mxu0 %v693
      %v808 = vpop.f32.mrf.mxu0
      %v809 = vadd.f32 0.0, %v808
      %810 = vmatmul.f32.gmra.mxu0 %v696
      %v811 = vpop.f32.mrf.mxu0
      %v812 = vadd.f32 0.0, %v811
      %813 = vmatmul.f32.gmra.mxu0 %v699
      %v814 = vpop.f32.mrf.mxu0
      %v815 = vadd.f32 0.0, %v814
      %816 = vmatmul.f32.gmra.mxu0 %v702
      %v817 = vpop.f32.mrf.mxu0
      %v818 = vadd.f32 0.0, %v817
      %819 = vmatmul.f32.gmra.mxu0 %v705
      %v820 = vpop.f32.mrf.mxu0
      %v821 = vadd.f32 0.0, %v820
      %822 = vmatmul.f32.gmra.mxu0 %v708
      %v823 = vpop.f32.mrf.mxu0
      %v824 = vadd.f32 0.0, %v823
      %825 = vmatmul.f32.gmra.mxu0 %v711
      %v826 = vpop.f32.mrf.mxu0
      %v827 = vadd.f32 0.0, %v826
      %828 = vmatmul.f32.gmra.mxu0 %v714
      %v829 = vpop.f32.mrf.mxu0
      %v830 = vadd.f32 0.0, %v829
      %831 = vmatmul.f32.gmra.mxu0 %v717
      %v832 = vpop.f32.mrf.mxu0
      %v833 = vadd.f32 0.0, %v832
      %834 = vmatmul.f32.gmra.mxu0 %v720
      %v835 = vpop.f32.mrf.mxu0
      %v836 = vadd.f32 0.0, %v835
      %837 = vmatmul.f32.gmra.mxu0 %v723
      %v838 = vpop.f32.mrf.mxu0
      %v839 = vadd.f32 0.0, %v838
      %840 = vmatmul.f32.gmra.mxu0 %v726
      %v841 = vpop.f32.mrf.mxu0
      %v842 = vadd.f32 0.0, %v841
      %843 = vmatmul.f32.gmra.mxu0 %v729
      %v844 = vpop.f32.mrf.mxu0
      %v845 = vadd.f32 0.0, %v844
      %846 = vmatmul.f32.gmra.mxu0 %v732
      %v847 = vpop.f32.mrf.mxu0
      %v848 = vadd.f32 0.0, %v847
      %849 = vmatmul.f32.gmra.mxu0 %v735
      %v850 = vpop.f32.mrf.mxu0
      %v851 = vadd.f32 0.0, %v850
      %852 = vmatmul.f32.gmra.mxu0 %v738
      %v853 = vpop.f32.mrf.mxu0
      %v854 = vadd.f32 0.0, %v853
      %855 = vmatmul.f32.gmra.mxu0 %v741
      %v856 = vpop.f32.mrf.mxu0
      %v857 = vadd.f32 0.0, %v856
      %858 = vdwg.mxu0
      %v859 = vadd.f32 %v612, %v764
      %v860 = vadd.f32 %v613, %v767
      %v861 = vadd.f32 %v614, %v770
      %v862 = vadd.f32 %v615, %v773
      %v863 = vadd.f32 %v616, %v776
      %v864 = vadd.f32 %v617, %v779
      %v865 = vadd.f32 %v618, %v782
      %v866 = vadd.f32 %v619, %v785
      %v867 = vadd.f32 %v620, %v788
      %v868 = vadd.f32 %v621, %v791
      %v869 = vadd.f32 %v622, %v794
      %v870 = vadd.f32 %v623, %v797
      %v871 = vadd.f32 %v624, %v800
      %v872 = vadd.f32 %v625, %v803
      %v873 = vadd.f32 %v626, %v806
      %v874 = vadd.f32 %v627, %v809
      %v875 = vadd.f32 %v628, %v812
      %v876 = vadd.f32 %v629, %v815
      %v877 = vadd.f32 %v630, %v818
      %v878 = vadd.f32 %v631, %v821
      %v879 = vadd.f32 %v632, %v824
      %v880 = vadd.f32 %v633, %v827
      %v881 = vadd.f32 %v634, %v830
      %v882 = vadd.f32 %v635, %v833
      %v883 = vadd.f32 %v636, %v836
      %v884 = vadd.f32 %v637, %v839
      %v885 = vadd.f32 %v638, %v842
      %v886 = vadd.f32 %v639, %v845
      %v887 = vadd.f32 %v640, %v848
      %v888 = vadd.f32 %v641, %v851
      %v889 = vadd.f32 %v642, %v854
      %v890 = vadd.f32 %v643, %v857
      %891 = vst [vmem:[%s192] sm:$0xff] %v859
      %892 = vst [vmem:[%s192 + $0x8] sm:$0xff] %v860
      %893 = vst [vmem:[%s192 + $0x10] sm:$0xff] %v861
      %894 = vst [vmem:[%s192 + $0x18] sm:$0xff] %v862
      %895 = vst [vmem:[%s192 + $0x20] sm:$0xff] %v863
      %896 = vst [vmem:[%s192 + $0x28] sm:$0xff] %v864
      %897 = vst [vmem:[%s192 + $0x30] sm:$0xff] %v865
      %898 = vst [vmem:[%s192 + $0x38] sm:$0xff] %v866
      %899 = vst [vmem:[%s192 + $0x40] sm:$0xff] %v867
      %900 = vst [vmem:[%s192 + $0x48] sm:$0xff] %v868
      %901 = vst [vmem:[%s192 + $0x50] sm:$0xff] %v869
      %902 = vst [vmem:[%s192 + $0x58] sm:$0xff] %v870
      %903 = vst [vmem:[%s192 + $0x60] sm:$0xff] %v871
      %904 = vst [vmem:[%s192 + $0x68] sm:$0xff] %v872
      %905 = vst [vmem:[%s192 + $0x70] sm:$0xff] %v873
      %906 = vst [vmem:[%s192 + $0x78] sm:$0xff] %v874
      %907 = vst [vmem:[%s192 + $0x80] sm:$0xff] %v875
      %908 = vst [vmem:[%s192 + $0x88] sm:$0xff] %v876
      %909 = vst [vmem:[%s192 + $0x90] sm:$0xff] %v877
      %910 = vst [vmem:[%s192 + $0x98] sm:$0xff] %v878
      %911 = vst [vmem:[%s192 + $0xa0] sm:$0xff] %v879
      %912 = vst [vmem:[%s192 + $0xa8] sm:$0xff] %v880
      %913 = vst [vmem:[%s192 + $0xb0] sm:$0xff] %v881
      %914 = vst [vmem:[%s192 + $0xb8] sm:$0xff] %v882
      %915 = vst [vmem:[%s192 + $0xc0] sm:$0xff] %v883
      %916 = vst [vmem:[%s192 + $0xc8] sm:$0xff] %v884
      %917 = vst [vmem:[%s192 + $0xd0] sm:$0xff] %v885
      %918 = vst [vmem:[%s192 + $0xd8] sm:$0xff] %v886
      %919 = vst [vmem:[%s192 + $0xe0] sm:$0xff] %v887
      %920 = vst [vmem:[%s192 + $0xe8] sm:$0xff] %v888
      %921 = vst [vmem:[%s192 + $0xf0] sm:$0xff] %v889
      %922 = vst [vmem:[%s192 + $0xf8] sm:$0xff] %v890
      %s923 = sadd.s32 %s194, 2
      %s924 = smul.u32 %s923, 16
      %s925 = scalar_lea.vmem %s183, %s924
      %v926 = vld [vmem:[%s925] sm:$0xff]
      %v927 = vld [vmem:[%s925 + $0x8] sm:$0xff]
      %v928 = vld [vmem:[%s925 + $0x10] sm:$0xff]
      %v929 = vld [vmem:[%s925 + $0x18] sm:$0xff]
      %v930 = vld [vmem:[%s925 + $0x20] sm:$0xff]
      %v931 = vld [vmem:[%s925 + $0x28] sm:$0xff]
      %v932 = vld [vmem:[%s925 + $0x30] sm:$0xff]
      %v933 = vld [vmem:[%s925 + $0x38] sm:$0xff]
      %v934 = vld [vmem:[%s925 + $0x40] sm:$0xff]
      %v935 = vld [vmem:[%s925 + $0x48] sm:$0xff]
      %v936 = vld [vmem:[%s925 + $0x50] sm:$0xff]
      %v937 = vld [vmem:[%s925 + $0x58] sm:$0xff]
      %v938 = vld [vmem:[%s925 + $0x60] sm:$0xff]
      %v939 = vld [vmem:[%s925 + $0x68] sm:$0xff]
      %v940 = vld [vmem:[%s925 + $0x70] sm:$0xff]
      %v941 = vld [vmem:[%s925 + $0x78] sm:$0xff]
      %v942 = vld [vmem:[%s925 + $0x80] sm:$0xff]
      %v943 = vld [vmem:[%s925 + $0x88] sm:$0xff]
      %v944 = vld [vmem:[%s925 + $0x90] sm:$0xff]
      %v945 = vld [vmem:[%s925 + $0x98] sm:$0xff]
      %v946 = vld [vmem:[%s925 + $0xa0] sm:$0xff]
      %v947 = vld [vmem:[%s925 + $0xa8] sm:$0xff]
      %v948 = vld [vmem:[%s925 + $0xb0] sm:$0xff]
      %v949 = vld [vmem:[%s925 + $0xb8] sm:$0xff]
      %v950 = vld [vmem:[%s925 + $0xc0] sm:$0xff]
      %v951 = vld [vmem:[%s925 + $0xc8] sm:$0xff]
      %v952 = vld [vmem:[%s925 + $0xd0] sm:$0xff]
      %v953 = vld [vmem:[%s925 + $0xd8] sm:$0xff]
      %v954 = vld [vmem:[%s925 + $0xe0] sm:$0xff]
      %v955 = vld [vmem:[%s925 + $0xe8] sm:$0xff]
      %v956 = vld [vmem:[%s925 + $0xf0] sm:$0xff]
      %v957 = vld [vmem:[%s925 + $0xf8] sm:$0xff]
      %v958 = vld [vmem:[%s192] sm:$0xff]
      %v959 = vld [vmem:[%s192 + $0x8] sm:$0xff]
      %v960 = vld [vmem:[%s192 + $0x10] sm:$0xff]
      %v961 = vld [vmem:[%s192 + $0x18] sm:$0xff]
      %v962 = vld [vmem:[%s192 + $0x20] sm:$0xff]
      %v963 = vld [vmem:[%s192 + $0x28] sm:$0xff]
      %v964 = vld [vmem:[%s192 + $0x30] sm:$0xff]
      %v965 = vld [vmem:[%s192 + $0x38] sm:$0xff]
      %v966 = vld [vmem:[%s192 + $0x40] sm:$0xff]
      %v967 = vld [vmem:[%s192 + $0x48] sm:$0xff]
      %v968 = vld [vmem:[%s192 + $0x50] sm:$0xff]
      %v969 = vld [vmem:[%s192 + $0x58] sm:$0xff]
      %v970 = vld [vmem:[%s192 + $0x60] sm:$0xff]
      %v971 = vld [vmem:[%s192 + $0x68] sm:$0xff]
      %v972 = vld [vmem:[%s192 + $0x70] sm:$0xff]
      %v973 = vld [vmem:[%s192 + $0x78] sm:$0xff]
      %v974 = vld [vmem:[%s192 + $0x80] sm:$0xff]
      %v975 = vld [vmem:[%s192 + $0x88] sm:$0xff]
      %v976 = vld [vmem:[%s192 + $0x90] sm:$0xff]
      %v977 = vld [vmem:[%s192 + $0x98] sm:$0xff]
      %v978 = vld [vmem:[%s192 + $0xa0] sm:$0xff]
      %v979 = vld [vmem:[%s192 + $0xa8] sm:$0xff]
      %v980 = vld [vmem:[%s192 + $0xb0] sm:$0xff]
      %v981 = vld [vmem:[%s192 + $0xb8] sm:$0xff]
      %v982 = vld [vmem:[%s192 + $0xc0] sm:$0xff]
      %v983 = vld [vmem:[%s192 + $0xc8] sm:$0xff]
      %v984 = vld [vmem:[%s192 + $0xd0] sm:$0xff]
      %v985 = vld [vmem:[%s192 + $0xd8] sm:$0xff]
      %v986 = vld [vmem:[%s192 + $0xe0] sm:$0xff]
      %v987 = vld [vmem:[%s192 + $0xe8] sm:$0xff]
      %v988 = vld [vmem:[%s192 + $0xf0] sm:$0xff]
      %v989 = vld [vmem:[%s192 + $0xf8] sm:$0xff]
      %s990 = scalar_lea.vmem %s1, 32
      %v991 = vld [vmem:[%s990] sm:$0xff]
      %v992 = vld [vmem:[%s990 + $0x8] sm:$0xf]
      %v994 = vsel %vm299, %v926, 0
      %v997 = vsel %vm299, %v927, 0
      %v1000 = vsel %vm299, %v928, 0
      %v1003 = vsel %vm299, %v929, 0
      %v1006 = vsel %vm299, %v930, 0
      %v1009 = vsel %vm299, %v931, 0
      %v1012 = vsel %vm299, %v932, 0
      %v1015 = vsel %vm299, %v933, 0
      %v1018 = vsel %vm299, %v934, 0
      %v1021 = vsel %vm299, %v935, 0
      %v1024 = vsel %vm299, %v936, 0
      %v1027 = vsel %vm299, %v937, 0
      %v1030 = vsel %vm299, %v938, 0
      %v1033 = vsel %vm299, %v939, 0
      %v1036 = vsel %vm299, %v940, 0
      %v1039 = vsel %vm299, %v941, 0
      %v1042 = vsel %vm299, %v942, 0
      %v1045 = vsel %vm299, %v943, 0
      %v1048 = vsel %vm299, %v944, 0
      %v1051 = vsel %vm299, %v945, 0
      %v1054 = vsel %vm299, %v946, 0
      %v1057 = vsel %vm299, %v947, 0
      %v1060 = vsel %vm299, %v948, 0
      %v1063 = vsel %vm299, %v949, 0
      %v1066 = vsel %vm299, %v950, 0
      %v1069 = vsel %vm299, %v951, 0
      %v1072 = vsel %vm299, %v952, 0
      %v1075 = vsel %vm299, %v953, 0
      %v1078 = vsel %vm299, %v954, 0
      %v1081 = vsel %vm299, %v955, 0
      %v1084 = vsel %vm299, %v956, 0
      %v1087 = vsel %vm299, %v957, 0
      %v1090 = vsel %vm396, %v992, 0
      %1092 = vmatpush.msra.mxu0 0.0
      %1093 = vmatpush.msra.mxu0 0.0
      %1094 = vmatpush.msra.mxu0 0.0
      %1095 = vmatpush.msra.mxu0 0.0
      %1096 = vmatpush.msra.mxu0 0.0
      %1097 = vmatpush.msra.mxu0 0.0
      %1098 = vmatpush.msra.mxu0 0.0
      %1099 = vmatpush.msra.mxu0 0.0
      %1100 = vmatpush.msra.mxu0 0.0
      %1101 = vmatpush.msra.mxu0 0.0
      %1102 = vmatpush.msra.mxu0 0.0
      %1103 = vmatpush.msra.mxu0 0.0
      %1104 = vmatpush.msra.mxu0 0.0
      %1105 = vmatpush.msra.mxu0 0.0
      %1106 = vmatpush.msra.mxu0 %v1090
      %1107 = vmatpush.msra.mxu0 %v991
      %1108 = vmatmul.f32.gmra.mxu0 %v994
      %v1109 = vpop.f32.mrf.mxu0
      %v1110 = vadd.f32 0.0, %v1109
      %1111 = vmatmul.f32.gmra.mxu0 %v997
      %v1112 = vpop.f32.mrf.mxu0
      %v1113 = vadd.f32 0.0, %v1112
      %1114 = vmatmul.f32.gmra.mxu0 %v1000
      %v1115 = vpop.f32.mrf.mxu0
      %v1116 = vadd.f32 0.0, %v1115
      %1117 = vmatmul.f32.gmra.mxu0 %v1003
      %v1118 = vpop.f32.mrf.mxu0
      %v1119 = vadd.f32 0.0, %v1118
      %1120 = vmatmul.f32.gmra.mxu0 %v1006
      %v1121 = vpop.f32.mrf.mxu0
      %v1122 = vadd.f32 0.0, %v1121
      %1123 = vmatmul.f32.gmra.mxu0 %v1009
      %v1124 = vpop.f32.mrf.mxu0
      %v1125 = vadd.f32 0.0, %v1124
      %1126 = vmatmul.f32.gmra.mxu0 %v1012
      %v1127 = vpop.f32.mrf.mxu0
      %v1128 = vadd.f32 0.0, %v1127
      %1129 = vmatmul.f32.gmra.mxu0 %v1015
      %v1130 = vpop.f32.mrf.mxu0
      %v1131 = vadd.f32 0.0, %v1130
      %1132 = vmatmul.f32.gmra.mxu0 %v1018
      %v1133 = vpop.f32.mrf.mxu0
      %v1134 = vadd.f32 0.0, %v1133
      %1135 = vmatmul.f32.gmra.mxu0 %v1021
      %v1136 = vpop.f32.mrf.mxu0
      %v1137 = vadd.f32 0.0, %v1136
      %1138 = vmatmul.f32.gmra.mxu0 %v1024
      %v1139 = vpop.f32.mrf.mxu0
      %v1140 = vadd.f32 0.0, %v1139
      %1141 = vmatmul.f32.gmra.mxu0 %v1027
      %v1142 = vpop.f32.mrf.mxu0
      %v1143 = vadd.f32 0.0, %v1142
      %1144 = vmatmul.f32.gmra.mxu0 %v1030
      %v1145 = vpop.f32.mrf.mxu0
      %v1146 = vadd.f32 0.0, %v1145
      %1147 = vmatmul.f32.gmra.mxu0 %v1033
      %v1148 = vpop.f32.mrf.mxu0
      %v1149 = vadd.f32 0.0, %v1148
      %1150 = vmatmul.f32.gmra.mxu0 %v1036
      %v1151 = vpop.f32.mrf.mxu0
      %v1152 = vadd.f32 0.0, %v1151
      %1153 = vmatmul.f32.gmra.mxu0 %v1039
      %v1154 = vpop.f32.mrf.mxu0
      %v1155 = vadd.f32 0.0, %v1154
      %1156 = vmatmul.f32.gmra.mxu0 %v1042
      %v1157 = vpop.f32.mrf.mxu0
      %v1158 = vadd.f32 0.0, %v1157
      %1159 = vmatmul.f32.gmra.mxu0 %v1045
      %v1160 = vpop.f32.mrf.mxu0
      %v1161 = vadd.f32 0.0, %v1160
      %1162 = vmatmul.f32.gmra.mxu0 %v1048
      %v1163 = vpop.f32.mrf.mxu0
      %v1164 = vadd.f32 0.0, %v1163
      %1165 = vmatmul.f32.gmra.mxu0 %v1051
      %v1166 = vpop.f32.mrf.mxu0
      %v1167 = vadd.f32 0.0, %v1166
      %1168 = vmatmul.f32.gmra.mxu0 %v1054
      %v1169 = vpop.f32.mrf.mxu0
      %v1170 = vadd.f32 0.0, %v1169
      %1171 = vmatmul.f32.gmra.mxu0 %v1057
      %v1172 = vpop.f32.mrf.mxu0
      %v1173 = vadd.f32 0.0, %v1172
      %1174 = vmatmul.f32.gmra.mxu0 %v1060
      %v1175 = vpop.f32.mrf.mxu0
      %v1176 = vadd.f32 0.0, %v1175
      %1177 = vmatmul.f32.gmra.mxu0 %v1063
      %v1178 = vpop.f32.mrf.mxu0
      %v1179 = vadd.f32 0.0, %v1178
      %1180 = vmatmul.f32.gmra.mxu0 %v1066
      %v1181 = vpop.f32.mrf.mxu0
      %v1182 = vadd.f32 0.0, %v1181
      %1183 = vmatmul.f32.gmra.mxu0 %v1069
      %v1184 = vpop.f32.mrf.mxu0
      %v1185 = vadd.f32 0.0, %v1184
      %1186 = vmatmul.f32.gmra.mxu0 %v1072
      %v1187 = vpop.f32.mrf.mxu0
      %v1188 = vadd.f32 0.0, %v1187
      %1189 = vmatmul.f32.gmra.mxu0 %v1075
      %v1190 = vpop.f32.mrf.mxu0
      %v1191 = vadd.f32 0.0, %v1190
      %1192 = vmatmul.f32.gmra.mxu0 %v1078
      %v1193 = vpop.f32.mrf.mxu0
      %v1194 = vadd.f32 0.0, %v1193
      %1195 = vmatmul.f32.gmra.mxu0 %v1081
      %v1196 = vpop.f32.mrf.mxu0
      %v1197 = vadd.f32 0.0, %v1196
      %1198 = vmatmul.f32.gmra.mxu0 %v1084
      %v1199 = vpop.f32.mrf.mxu0
      %v1200 = vadd.f32 0.0, %v1199
      %1201 = vmatmul.f32.gmra.mxu0 %v1087
      %v1202 = vpop.f32.mrf.mxu0
      %v1203 = vadd.f32 0.0, %v1202
      %1204 = vdwg.mxu0
      %v1205 = vadd.f32 %v958, %v1110
      %v1206 = vadd.f32 %v959, %v1113
      %v1207 = vadd.f32 %v960, %v1116
      %v1208 = vadd.f32 %v961, %v1119
      %v1209 = vadd.f32 %v962, %v1122
      %v1210 = vadd.f32 %v963, %v1125
      %v1211 = vadd.f32 %v964, %v1128
      %v1212 = vadd.f32 %v965, %v1131
      %v1213 = vadd.f32 %v966, %v1134
      %v1214 = vadd.f32 %v967, %v1137
      %v1215 = vadd.f32 %v968, %v1140
      %v1216 = vadd.f32 %v969, %v1143
      %v1217 = vadd.f32 %v970, %v1146
      %v1218 = vadd.f32 %v971, %v1149
      %v1219 = vadd.f32 %v972, %v1152
      %v1220 = vadd.f32 %v973, %v1155
      %v1221 = vadd.f32 %v974, %v1158
      %v1222 = vadd.f32 %v975, %v1161
      %v1223 = vadd.f32 %v976, %v1164
      %v1224 = vadd.f32 %v977, %v1167
      %v1225 = vadd.f32 %v978, %v1170
      %v1226 = vadd.f32 %v979, %v1173
      %v1227 = vadd.f32 %v980, %v1176
      %v1228 = vadd.f32 %v981, %v1179
      %v1229 = vadd.f32 %v982, %v1182
      %v1230 = vadd.f32 %v983, %v1185
      %v1231 = vadd.f32 %v984, %v1188
      %v1232 = vadd.f32 %v985, %v1191
      %v1233 = vadd.f32 %v986, %v1194
      %v1234 = vadd.f32 %v987, %v1197
      %v1235 = vadd.f32 %v988, %v1200
      %v1236 = vadd.f32 %v989, %v1203
      %1237 = vst [vmem:[%s192] sm:$0xff] %v1205
      %1238 = vst [vmem:[%s192 + $0x8] sm:$0xff] %v1206
      %1239 = vst [vmem:[%s192 + $0x10] sm:$0xff] %v1207
      %1240 = vst [vmem:[%s192 + $0x18] sm:$0xff] %v1208
      %1241 = vst [vmem:[%s192 + $0x20] sm:$0xff] %v1209
      %1242 = vst [vmem:[%s192 + $0x28] sm:$0xff] %v1210
      %1243 = vst [vmem:[%s192 + $0x30] sm:$0xff] %v1211
      %1244 = vst [vmem:[%s192 + $0x38] sm:$0xff] %v1212
      %1245 = vst [vmem:[%s192 + $0x40] sm:$0xff] %v1213
      %1246 = vst [vmem:[%s192 + $0x48] sm:$0xff] %v1214
      %1247 = vst [vmem:[%s192 + $0x50] sm:$0xff] %v1215
      %1248 = vst [vmem:[%s192 + $0x58] sm:$0xff] %v1216
      %1249 = vst [vmem:[%s192 + $0x60] sm:$0xff] %v1217
      %1250 = vst [vmem:[%s192 + $0x68] sm:$0xff] %v1218
      %1251 = vst [vmem:[%s192 + $0x70] sm:$0xff] %v1219
      %1252 = vst [vmem:[%s192 + $0x78] sm:$0xff] %v1220
      %1253 = vst [vmem:[%s192 + $0x80] sm:$0xff] %v1221
      %1254 = vst [vmem:[%s192 + $0x88] sm:$0xff] %v1222
      %1255 = vst [vmem:[%s192 + $0x90] sm:$0xff] %v1223
      %1256 = vst [vmem:[%s192 + $0x98] sm:$0xff] %v1224
      %1257 = vst [vmem:[%s192 + $0xa0] sm:$0xff] %v1225
      %1258 = vst [vmem:[%s192 + $0xa8] sm:$0xff] %v1226
      %1259 = vst [vmem:[%s192 + $0xb0] sm:$0xff] %v1227
      %1260 = vst [vmem:[%s192 + $0xb8] sm:$0xff] %v1228
      %1261 = vst [vmem:[%s192 + $0xc0] sm:$0xff] %v1229
      %1262 = vst [vmem:[%s192 + $0xc8] sm:$0xff] %v1230
      %1263 = vst [vmem:[%s192 + $0xd0] sm:$0xff] %v1231
      %1264 = vst [vmem:[%s192 + $0xd8] sm:$0xff] %v1232
      %1265 = vst [vmem:[%s192 + $0xe0] sm:$0xff] %v1233
      %1266 = vst [vmem:[%s192 + $0xe8] sm:$0xff] %v1234
      %1267 = vst [vmem:[%s192 + $0xf0] sm:$0xff] %v1235
      %1268 = vst [vmem:[%s192 + $0xf8] sm:$0xff] %v1236
      %s1269 = smul.u32 32, %s19
      %p1270 = scmp.lt.s32.totalorder %s18, 1
      %s1271 = scalar_select %p1270, %s18, 1
      %p1272 = scmp.lt.s32.totalorder %s1269, 31
      %s1273 = scalar_select %p1272, %s1269, 31
      %s1274 = smul.addr %s1271, 32
      %s1275 = sadd.s32 %s1273, %s1274
      %s1276 = smul.addr %s1275, 8
      %s1277 = scalar_lea.vmem %s3, %s1276
      // Predicated region
      $region33: #{prob_conv2d_forward.1} parent=31 // pred_check
        %p1278 = pneg %p114
      $region34: #{prob_conv2d_forward.1} parent=31 // pred_check_branch
        %1280 = sbr.rel (%p1278) target = $region36
      $region35: #{prob_conv2d_forward.1} parent=31 // pred_region
        %s1281 = smul.u32 32, %s19
      $region36: #{prob_conv2d_forward.1} parent=31 // pred_fallthru
        _
    $region32: #{prob_conv2d_forward.1} parent=5 // pred_fallthru
      _
    %p1282 = scmp.le.s32.totalorder 2, %s9
    // Predicated region
    $region37: #{prob_conv2d_forward.1} parent=5 // pred_check
      %p1283 = pneg %p1282
    $region38: #{prob_conv2d_forward.1} parent=5 // pred_check_branch
      %1285 = sbr.rel (%p1283) target = $region40
    $region39: #{prob_conv2d_forward.1} parent=5 // pred_region
      %s1286 = ssub.s32 %s9, 2
      // Predicated region
      $region41: #{prob_conv2d_forward.1} parent=39 // pred_check
        %p1287 = pneg %p120
      $region42: #{prob_conv2d_forward.1} parent=39 // pred_check_branch
        %1289 = sbr.rel (%p1287) target = $region44
      $region43: #{prob_conv2d_forward.1} parent=39 // pred_region
        %s1290 = smul.u32 32, %s21
        %p1291 = scmp.lt.s32.totalorder %s20, 1
        %s1292 = scalar_select %p1291, %s20, 1
        %p1293 = scmp.lt.s32.totalorder %s1290, 31
        %s1294 = scalar_select %p1293, %s1290, 31
        %s1295 = smul.addr %s1292, 32
        %s1296 = sadd.s32 %s1294, %s1295
        %s1297 = smul.addr %s1296, 8
        %s1298 = scalar_lea.vmem %s3, %s1297
      $region44: #{prob_conv2d_forward.1} parent=39 // pred_fallthru
        _
    $region40: #{prob_conv2d_forward.1} parent=5 // pred_fallthru
      _
  $region6: #{prob_conv2d_forward.1} parent=0 // loop_footer
    %s13 = sadd.s32 1, %s9
  $region7: #{prob_conv2d_forward.1} parent=0 // loop_footer_branch
    %8 = sbr.rel target = $region3
  $region8: #{prob_conv2d_forward.1} parent=0 // loop_exit
    _

</llo_original>
